<compile_context>
chip_gen: v7x
topology: tpu7x:2x2x1
jax: 0.10.0
libtpu: 0.0.40
codegen_flags: <defaults>
</compile_context>

<pallas_src>
import jax
import jax.numpy as jnp
from jax.experimental import pallas as pl
from jax.experimental.pallas import tpu as pltpu

_LANES = 128
_SUBLANES = 8
_TBR_MAX = 1024  # rows of 128 lanes per grid step -> 128K batch elems / step


def _round_up(n: int, m: int) -> int:
    return ((n + m - 1) // m) * m


def _dqn_kernel(w_ref, b_ref, x_ref, o_ref):
    """w_ref: (F*O,) f32 SMEM, b_ref: (O,) f32 SMEM,
    x_ref: (F, tbr, 128) f32 VMEM (batch sublane+lane dense),
    o_ref: (O, tbr, 128) f32 VMEM (lane-dense store)."""
    F = x_ref.shape[0]
    O = o_ref.shape[0]
    for o in range(O):                       # O == 1 for DQN; static unroll
        # w[f, o] == w_flat[f * O + o] (row-major flatten of (F, O))
        z = x_ref[0] * w_ref[o] + b_ref[o]
        for f in range(1, F):                # F == 3; static unroll -> VPU FMAs
            z = z + x_ref[f] * w_ref[f * O + o]
        # sigmoid(z) = 0.5 * tanh(0.5 * z) + 0.5 : one EUP op instead of exp + divide.
        o_ref[o] = (0.5 * jnp.tanh(0.5 * z) + 0.5).astype(o_ref.dtype)


@jax.jit
def dqn_forward(x, w, b):
    """x: (B, F) f32; w: (F, O) f32; b: (O,) f32  ->  sigmoid(x @ w + b), (B, O)."""
    B, F = x.shape
    Fw, O = w.shape
    assert F == Fw and b.shape == (O,)

    # ---- batch tiling: rows of 128 lanes, tile rows a multiple of 8 --------
    R0 = -(-B // _LANES)                      # cdiv(B, 128)
    if R0 <= _SUBLANES:
        tbr = R0                              # single full-array block (waives /8 rule)
        r_pad = R0
    else:
        # >= 2 grid steps when possible (keeps both v7x TensorCores busy),
        # capped by a VMEM-friendly max tile.
        tbr = min(_TBR_MAX, _round_up((R0 + 1) // 2, _SUBLANES))
        r_pad = _round_up(R0, tbr)
    b_pad = r_pad * _LANES
    grid = (r_pad // tbr,)

    # ---- host-side layout plumbing ----------------------------------------
    # TODO(synk): ideally the producer emits x already in (F, B) layout so this
    # one-time transpose (extra ~2x HBM traffic on x) disappears entirely.
    x_f = x.astype(jnp.float32)
    if b_pad != B:
        x_f = jnp.pad(x_f, ((0, b_pad - B), (0, 0)))
    x_t = x_f.T.reshape(F, r_pad, _LANES)     # (F, R, 128): batch sublane+lane dense

    w_flat = w.astype(jnp.float32).reshape(-1)  # (F*O,)
    b_f = b.astype(jnp.float32)                 # (O,)

    out = pl.pallas_call(
        _dqn_kernel,
        out_shape=jax.ShapeDtypeStruct((O, r_pad, _LANES), jnp.float32),
        grid=grid,
        in_specs=[
            pl.BlockSpec(memory_space=pltpu.MemorySpace.SMEM),      # w_flat (3 scalars)
            pl.BlockSpec(memory_space=pltpu.MemorySpace.SMEM),      # b (1 scalar)
            pl.BlockSpec((F, tbr, _LANES), lambda i: (0, i, 0)),    # x tile
        ],
        out_specs=pl.BlockSpec((O, tbr, _LANES), lambda i: (0, i, 0)),
        compiler_params=pltpu.CompilerParams(
            dimension_semantics=("parallel",)
        ),
    )(w_flat, b_f, x_t)                       # (O, r_pad, 128)

    # Free reshape + slice (and a trivial (1,B)->(B,1) swap for O == 1).
    return out.reshape(O, b_pad)[:, :B].T


if __name__ == "__main__":
    input_dim = 3
    output_dim = 1
    batch = 8

    key = jax.random.PRNGKey(0)
    kx, kw, kb = jax.random.split(key, 3)

    # Deterministic parameter init (mimic nn.Linear uniform(-1/sqrt(in), 1/sqrt(in))).
    bound = 1.0 / (input_dim ** 0.5)
    w = jax.random.uniform(kw, (input_dim, output_dim), jnp.float32, -bound, bound)
    b = jax.random.uniform(kb, (output_dim,), jnp.float32, -bound, bound)

    x = jax.random.normal(kx, (batch, input_dim), jnp.float32)

    y = dqn_forward(x, w, b)
    jax.block_until_ready(y)

    # Sanity check against plain-JAX reference.
    y_ref = jax.nn.sigmoid(x @ w + b)
    assert y.shape == (batch, output_dim)
    assert jnp.allclose(y, y_ref, atol=1e-5, rtol=1e-5)

    print("KERNEL_OK")
</pallas_src>

<mosaic_0001>
module attributes {stable_mosaic.version = 11 : i64} {
  func.func @_dqn_kernel(%arg0: i32, %arg1: memref<3xf32, #tpu.memory_space<smem>>, %arg2: memref<1xf32, #tpu.memory_space<smem>>, %arg3: memref<3x1x128xf32, #tpu.memory_space<vmem>>, %arg4: memref<1x1x128xf32, #tpu.memory_space<vmem>>) attributes {dimension_semantics = [#tpu.dimension_semantics<parallel>], iteration_bounds = array<i64: 1>, scalar_prefetch = 0 : i64, scratch_operands = 0 : i64, tpu.core_type = #tpu.core_type<tc>, window_params = [{transform_indices = @transform_0, window_bounds = array<i64: 3>}, {transform_indices = @transform_1, window_bounds = array<i64: 1>}, {transform_indices = @transform_2, window_bounds = array<i64: 3, 1, 128>}, {transform_indices = @transform_3, window_bounds = array<i64: 1, 1, 128>}]} {
    %c0 = arith.constant 0 : index
    %c0_0 = arith.constant 0 : index
    %c0_1 = arith.constant 0 : index
    %0 = vector.load %arg3[%c0, %c0_0, %c0_1] : memref<3x1x128xf32, #tpu.memory_space<vmem>>, vector<1x1x128xf32>
    %1 = vector.shape_cast %0 : vector<1x1x128xf32> to vector<1x128xf32>
    %c0_2 = arith.constant 0 : index
    %2 = memref.load %arg1[%c0_2] : memref<3xf32, #tpu.memory_space<smem>>
    %3 = vector.broadcast %2 : f32 to vector<1x128xf32>
    %4 = arith.mulf %1, %3 : vector<1x128xf32>
    %c0_3 = arith.constant 0 : index
    %5 = memref.load %arg2[%c0_3] : memref<1xf32, #tpu.memory_space<smem>>
    %6 = vector.broadcast %5 : f32 to vector<1x128xf32>
    %7 = arith.addf %4, %6 : vector<1x128xf32>
    %c1 = arith.constant 1 : index
    %c0_4 = arith.constant 0 : index
    %c0_5 = arith.constant 0 : index
    %8 = vector.load %arg3[%c1, %c0_4, %c0_5] : memref<3x1x128xf32, #tpu.memory_space<vmem>>, vector<1x1x128xf32>
    %9 = vector.shape_cast %8 : vector<1x1x128xf32> to vector<1x128xf32>
    %c1_6 = arith.constant 1 : index
    %10 = memref.load %arg1[%c1_6] : memref<3xf32, #tpu.memory_space<smem>>
    %11 = vector.broadcast %10 : f32 to vector<1x128xf32>
    %12 = arith.mulf %9, %11 : vector<1x128xf32>
    %13 = arith.addf %7, %12 : vector<1x128xf32>
    %c2 = arith.constant 2 : index
    %c0_7 = arith.constant 0 : index
    %c0_8 = arith.constant 0 : index
    %14 = vector.load %arg3[%c2, %c0_7, %c0_8] : memref<3x1x128xf32, #tpu.memory_space<vmem>>, vector<1x1x128xf32>
    %15 = vector.shape_cast %14 : vector<1x1x128xf32> to vector<1x128xf32>
    %c2_9 = arith.constant 2 : index
    %16 = memref.load %arg1[%c2_9] : memref<3xf32, #tpu.memory_space<smem>>
    %17 = vector.broadcast %16 : f32 to vector<1x128xf32>
    %18 = arith.mulf %15, %17 : vector<1x128xf32>
    %19 = arith.addf %13, %18 : vector<1x128xf32>
    %cst = arith.constant 5.000000e-01 : f32
    %20 = vector.broadcast %cst : f32 to vector<1x128xf32>
    %21 = arith.mulf %20, %19 : vector<1x128xf32>
    %22 = math.tanh %21 : vector<1x128xf32>
    %cst_10 = arith.constant 5.000000e-01 : f32
    %23 = vector.broadcast %cst_10 : f32 to vector<1x128xf32>
    %24 = arith.mulf %23, %22 : vector<1x128xf32>
    %cst_11 = arith.constant 5.000000e-01 : f32
    %25 = vector.broadcast %cst_11 : f32 to vector<1x128xf32>
    %26 = arith.addf %24, %25 : vector<1x128xf32>
    %c0_12 = arith.constant 0 : index
    %c0_13 = arith.constant 0 : index
    %c0_14 = arith.constant 0 : index
    %27 = vector.load %arg4[%c0_12, %c0_13, %c0_14] : memref<1x1x128xf32, #tpu.memory_space<vmem>>, vector<1x1x128xf32>
    %28 = vector.shape_cast %27 : vector<1x1x128xf32> to vector<1x128xf32>
    %29 = vector.shape_cast %26 : vector<1x128xf32> to vector<1x1x128xf32>
    tpu.vector_store %arg4[%c0_12, %c0_13, %c0_14], %29 {strides = array<i32>} : memref<1x1x128xf32, #tpu.memory_space<vmem>>, vector<1x1x128xf32>,
    return
  }
  func.func @transform_0(%arg0: i32) -> i32 {
    %c0_i32 = arith.constant 0 : i32
    %c0_i32_0 = arith.constant 0 : i32
    return %c0_i32 : i32
  }
  func.func @transform_1(%arg0: i32) -> i32 {
    %c0_i32 = arith.constant 0 : i32
    %c0_i32_0 = arith.constant 0 : i32
    return %c0_i32 : i32
  }
  func.func @transform_2(%arg0: i32) -> (i32, i32, i32) {
    %c0_i32 = arith.constant 0 : i32
    %c0_i32_0 = arith.constant 0 : i32
    %c0_i32_1 = arith.constant 0 : i32
    return %c0_i32, %arg0, %c0_i32_0 : i32, i32, i32
  }
  func.func @transform_3(%arg0: i32) -> (i32, i32, i32) {
    %c0_i32 = arith.constant 0 : i32
    %c0_i32_0 = arith.constant 0 : i32
    %c0_i32_1 = arith.constant 0 : i32
    return %c0_i32, %arg0, %c0_i32_0 : i32, i32, i32
  }
}

</mosaic_0001>

<llo_original>
// kernel: dqn_forward.1
$region0: #{dqn_forward.1}
  #allocation0 [shape = 'u32[]', space=smem, size = 0x4, offset = 0x4, fixed_abs, tag = 'smem constant byte address 0x4 - core index']
  #allocation1 [shape = 'u32[144,128]{1,0:T(1,128)}', space=vmem, size = 0x12000, scoped, tag = 'internal scratch']
  #allocation2 [shape = 'f32[1]{0:T(128)S(6)}', space=smem, size = 0x200, scoped, tag = 'scoped memory for dqn_forward.1']
  %s0 = inlined_call_operand.vmem [shape: f32[3], index: 0, kind: input, shape index: {}]
  %s1 = inlined_call_operand.<no memory space> [shape: f32[1], index: 1, kind: input, shape index: {}]
  %s2 = inlined_call_operand.vmem [shape: f32[3,1,128], index: 2, kind: input, shape index: {}]
  %s3 = inlined_call_operand.vmem [shape: f32[1,1,128], index: 3, kind: output, shape index: {}]
  %s4 = sld [smem:[#allocation0]]
  $region26: #{dqn_forward.1} parent=0
    _
  %s6 = ssub.s32 1, %s4
  %s7 = scalar_select 0, %s6, %s4
  %8 = sst [smem:[#allocation2]] %s1
  $region1: #{dqn_forward.1} parent=0
    #allocation3 [shape = 'u8[512]{0}', space=smem, size = 0x200, scoped, tag = 'input window, operand 0, single buffered']
    #allocation4 [shape = 's32[1]{0}', space=sflag, size = 0x4, scoped, tag = 'scoped memory for dqn_forward.1']
    %9 = vsyncpa [#allocation4], 0
    // Predicated region
    $region2: #{dqn_forward.1} parent=1 // pred_check
      _
    $region3: #{dqn_forward.1} parent=1 // pred_check_branch
      %11 = sbr.rel (0) target = $region5
    $region4: #{dqn_forward.1} parent=1 // pred_region
      %s13 = ssub.s32 16, 16
      %14 = vsyncadd [#allocation4], %s13
      %s16 = sshll.u32 %s0, 4
      %s17 = int_to_ptr.vmem [resolvable:$true] %s16
      %19 = dma.vmem_to_smem %s17, 16, [#allocation3], [#allocation4]
    $region5: #{dqn_forward.1} parent=1 // pred_fallthru
      _
    // Predicated region
    $region6: #{dqn_forward.1} parent=1 // pred_check
      _
    $region7: #{dqn_forward.1} parent=1 // pred_check_branch
      %21 = sbr.rel (0) target = $region9
    $region8: #{dqn_forward.1} parent=1 // pred_region
      _
    $region9: #{dqn_forward.1} parent=1 // pred_fallthru
      _
    // Predicated region
    $region10: #{dqn_forward.1} parent=1 // pred_check
      _
    $region11: #{dqn_forward.1} parent=1 // pred_check_branch
      %23 = sbr.rel (0) target = $region13
    $region12: #{dqn_forward.1} parent=1 // pred_region
      _
    $region13: #{dqn_forward.1} parent=1 // pred_fallthru
      _
    // Predicated region
    $region14: #{dqn_forward.1} parent=1 // pred_check
      _
    $region15: #{dqn_forward.1} parent=1 // pred_check_branch
      %25 = sbr.rel (0) target = $region17
    $region16: #{dqn_forward.1} parent=1 // pred_region
      %26 = dma.done [#allocation4], 16
    $region17: #{dqn_forward.1} parent=1 // pred_fallthru
      _
    %27 = sfence
    %v28 = vld [vmem:[%s2] sm:$0x1]
    %s29 = sld [smem:[#allocation3]]
    %v30 = vstv %s29
    %v31 = vmul.f32 %v28, %v30
    %s32 = sld [smem:[#allocation2]]
    %v33 = vstv %s32
    %v34 = vadd.f32 %v31, %v33
    %s35 = scalar_lea.vmem %s2, 1
    %v36 = vld [vmem:[%s35] sm:$0x1]
    %s37 = sld [smem:[#allocation3 + $0x1]]
    %v38 = vstv %s37
    %v39 = vmul.f32 %v36, %v38
    %v40 = vadd.f32 %v34, %v39
    %s41 = scalar_lea.vmem %s2, 2
    %v42 = vld [vmem:[%s41] sm:$0x1]
    %s43 = sld [smem:[#allocation3 + $0x2]]
    %v44 = vstv %s43
    %v45 = vmul.f32 %v42, %v44
    %v46 = vadd.f32 %v40, %v45
    %v47 = vmul.f32 %v46, 0.5
    %v48 = vtanh.pop %v47
    %v49 = vmul.f32 %v48, 0.5
    %v50 = vadd.f32 %v49, 0.5
    %51 = vst [vmem:[%s3] sm:$0x1] %v50
    // Predicated region
    $region18: #{dqn_forward.1} parent=1 // pred_check
      _
    $region19: #{dqn_forward.1} parent=1 // pred_check_branch
      %53 = sbr.rel (0) target = $region21
    $region20: #{dqn_forward.1} parent=1 // pred_region
      _
    $region21: #{dqn_forward.1} parent=1 // pred_fallthru
      _
    // Predicated region
    $region22: #{dqn_forward.1} parent=1 // pred_check
      _
    $region23: #{dqn_forward.1} parent=1 // pred_check_branch
      %55 = sbr.rel (0) target = $region25
    $region24: #{dqn_forward.1} parent=1 // pred_region
      _
    $region25: #{dqn_forward.1} parent=1 // pred_fallthru
      _
    %56 = vsyncpa [#allocation4], 1

</llo_original>
